<compile_context>
chip_gen: v7x
topology: tpu7x:2x2x1
jax: 0.10.0
libtpu: 0.0.40
codegen_flags: <defaults>
</compile_context>

<pallas_src>
import jax
import jax.numpy as jnp
from jax.experimental import pallas as pl
from jax.experimental.pallas import tpu as pltpu

SUBLANE = 8     # f32 sublane width (second-to-last dim)


def _round_up(v, m):
    return (v + m - 1) // m * m


def ffn_kernel(x_ref, w1_ref, b1_ref, w2_ref, b2_ref, o_ref):
    # x_ref:  (tm, D) tile of flattened tokens (f32)
    # w1_ref: (D, H), b1_ref: (1, H)
    # w2_ref: (H, D), b2_ref: (1, D)
    h = jnp.dot(x_ref[...], w1_ref[...],
                preferred_element_type=jnp.float32,
                precision=jax.lax.Precision.HIGHEST)
    h = jnp.maximum(h + b1_ref[...], 0.0)          # bias + ReLU on the VPU (f32)
    o = jnp.dot(h, w2_ref[...],
                preferred_element_type=jnp.float32,
                precision=jax.lax.Precision.HIGHEST)
    o_ref[...] = (o + b2_ref[...]).astype(o_ref.dtype)


def feed_forward(x, w1, b1, w2, b2, *, tm=2048):
    """x: (B, S, D) float32; w1: (D, H); b1: (H,); w2: (H, D); b2: (D,).

    Returns (B, S, D). Fused Linear -> ReLU -> Linear.
    """
    B, S, D = x.shape
    H = w1.shape[1]
    M = B * S

    # Only rows are padded (to the sublane / tile multiple); features stay at
    # their true width so the dominant HBM streams are not inflated.
    M8 = _round_up(M, SUBLANE)
    # Guarantee >=2 grid steps whenever there is more than one sublane row
    # group, so both v7x TensorCores receive work; also cap at the default tm.
    if M8 > SUBLANE:
        tm = min(tm, _round_up(pl.cdiv(M8, 2), SUBLANE))
    else:
        tm = min(tm, M8)
    Mp = _round_up(M8, tm)          # grid divides evenly -> no partial tiles

    x2d = x.reshape(M, D)
    if Mp != M:
        x2d = jnp.zeros((Mp, D), x.dtype).at[:M, :].set(x2d)

    b1_2d = b1.reshape(1, H)
    b2_2d = b2.reshape(1, D)

    grid = (Mp // tm,)
    single_buf = dict(pipeline_mode=pl.Buffered(1))   # weights never re-index

    cost = pl.CostEstimate(
        flops=2 * M * (D * H + H * D),
        transcendentals=0,
        bytes_accessed=4 * (2 * M * D + D * H + H * D + H + D),
    )

    out2d = pl.pallas_call(
        ffn_kernel,
        out_shape=jax.ShapeDtypeStruct((Mp, D), x.dtype),
        grid_spec=pltpu.PrefetchScalarGridSpec(
            num_scalar_prefetch=0,
            grid=grid,
            in_specs=[
                pl.BlockSpec((tm, D), lambda i: (i, 0)),                # x tile
                pl.BlockSpec((D, H), lambda i: (0, 0), **single_buf),   # W1
                pl.BlockSpec((1, H), lambda i: (0, 0), **single_buf),   # b1
                pl.BlockSpec((H, D), lambda i: (0, 0), **single_buf),   # W2
                pl.BlockSpec((1, D), lambda i: (0, 0), **single_buf),   # b2
            ],
            out_specs=pl.BlockSpec((tm, D), lambda i: (i, 0)),
        ),
        compiler_params=pltpu.CompilerParams(
            dimension_semantics=("parallel",)),
        cost_estimate=cost,
    )(x2d, w1, b1_2d, w2, b2_2d)

    if Mp != M:
        out2d = out2d[:M, :]
    return out2d.reshape(B, S, D)


if __name__ == "__main__":
    # Small deterministic shapes: batch=2, seq=8, d_model=32, d_hidden=64.
    B, S, D, H = 2, 8, 32, 64
    key = jax.random.PRNGKey(0)
    kx, k1, kb1, k2, kb2 = jax.random.split(key, 5)

    x = jax.random.normal(kx, (B, S, D), dtype=jnp.float32)
    # nn.Linear-style init (uniform in +-1/sqrt(fan_in)), stored as (in, out).
    w1 = jax.random.uniform(k1, (D, H), jnp.float32, -1.0, 1.0) / jnp.sqrt(D)
    b1 = jax.random.uniform(kb1, (H,), jnp.float32, -1.0, 1.0) / jnp.sqrt(D)
    w2 = jax.random.uniform(k2, (H, D), jnp.float32, -1.0, 1.0) / jnp.sqrt(H)
    b2 = jax.random.uniform(kb2, (D,), jnp.float32, -1.0, 1.0) / jnp.sqrt(H)

    out = feed_forward(x, w1, b1, w2, b2)
    out = jax.block_until_ready(out)

    # Pure-JAX reference of Linear -> ReLU -> Linear (f32-exact matmuls to
    # match the kernel's HIGHEST-precision dots).
    hi = jax.lax.Precision.HIGHEST
    ref = jnp.dot(
        jnp.maximum(jnp.dot(x, w1, precision=hi) + b1, 0.0), w2,
        precision=hi) + b2
    assert out.shape == (B, S, D)
    assert jnp.allclose(out, ref, atol=1e-5, rtol=1e-5)

    print("KERNEL_OK")
</pallas_src>

<mosaic_0001>
module attributes {stable_mosaic.version = 11 : i64} {
  func.func @ffn_kernel(%arg0: i32, %arg1: memref<8x32xf32, #tpu.memory_space<vmem>>, %arg2: memref<32x64xf32, #tpu.memory_space<vmem>>, %arg3: memref<1x64xf32, #tpu.memory_space<vmem>>, %arg4: memref<64x32xf32, #tpu.memory_space<vmem>>, %arg5: memref<1x32xf32, #tpu.memory_space<vmem>>, %arg6: memref<8x32xf32, #tpu.memory_space<vmem>>) attributes {dimension_semantics = [#tpu.dimension_semantics<parallel>], iteration_bounds = array<i64: 2>, scalar_prefetch = 0 : i64, scratch_operands = 0 : i64, tpu.core_type = #tpu.core_type<tc>, window_params = [{transform_indices = @transform_0, window_bounds = array<i64: 8, 32>}, {pipeline_mode = #tpu.pipeline_mode<synchronous>, transform_indices = @transform_1, window_bounds = array<i64: 32, 64>}, {pipeline_mode = #tpu.pipeline_mode<synchronous>, transform_indices = @transform_2, window_bounds = array<i64: 1, 64>}, {pipeline_mode = #tpu.pipeline_mode<synchronous>, transform_indices = @transform_3, window_bounds = array<i64: 64, 32>}, {pipeline_mode = #tpu.pipeline_mode<synchronous>, transform_indices = @transform_4, window_bounds = array<i64: 1, 32>}, {transform_indices = @transform_5, window_bounds = array<i64: 8, 32>}]} {
    %c0 = arith.constant 0 : index
    %c0_0 = arith.constant 0 : index
    %0 = vector.load %arg1[%c0, %c0_0] : memref<8x32xf32, #tpu.memory_space<vmem>>, vector<8x32xf32>
    %c0_1 = arith.constant 0 : index
    %c0_2 = arith.constant 0 : index
    %1 = vector.load %arg2[%c0_1, %c0_2] : memref<32x64xf32, #tpu.memory_space<vmem>>, vector<32x64xf32>
    %cst = arith.constant dense<0.000000e+00> : vector<8x64xf32>
    %2 = tpu.matmul %0, %1, %cst {dimension_numbers = #tpu.dot_dimension_numbers<[1], [0], [0], [1], [0, 0, 1, 1], [], []>, precision = #tpu.contract_precision<fp32>} : vector<8x32xf32>, vector<32x64xf32>, vector<8x64xf32> -> vector<8x64xf32>
    %c0_3 = arith.constant 0 : index
    %c0_4 = arith.constant 0 : index
    %3 = vector.load %arg3[%c0_3, %c0_4] : memref<1x64xf32, #tpu.memory_space<vmem>>, vector<1x64xf32>
    %4 = vector.broadcast %3 : vector<1x64xf32> to vector<8x64xf32>
    %5 = arith.addf %2, %4 : vector<8x64xf32>
    %cst_5 = arith.constant 0.000000e+00 : f32
    %6 = vector.broadcast %cst_5 : f32 to vector<8x64xf32>
    %7 = arith.maximumf %5, %6 : vector<8x64xf32>
    %c0_6 = arith.constant 0 : index
    %c0_7 = arith.constant 0 : index
    %8 = vector.load %arg4[%c0_6, %c0_7] : memref<64x32xf32, #tpu.memory_space<vmem>>, vector<64x32xf32>
    %cst_8 = arith.constant dense<0.000000e+00> : vector<8x32xf32>
    %9 = tpu.matmul %7, %8, %cst_8 {dimension_numbers = #tpu.dot_dimension_numbers<[1], [0], [0], [1], [0, 0, 1, 1], [], []>, precision = #tpu.contract_precision<fp32>} : vector<8x64xf32>, vector<64x32xf32>, vector<8x32xf32> -> vector<8x32xf32>
    %c0_9 = arith.constant 0 : index
    %c0_10 = arith.constant 0 : index
    %10 = vector.load %arg5[%c0_9, %c0_10] : memref<1x32xf32, #tpu.memory_space<vmem>>, vector<1x32xf32>
    %11 = vector.broadcast %10 : vector<1x32xf32> to vector<8x32xf32>
    %12 = arith.addf %9, %11 : vector<8x32xf32>
    %c0_11 = arith.constant 0 : index
    %c0_12 = arith.constant 0 : index
    %13 = vector.load %arg6[%c0_11, %c0_12] : memref<8x32xf32, #tpu.memory_space<vmem>>, vector<8x32xf32>
    tpu.vector_store %arg6[%c0_11, %c0_12], %12 {strides = array<i32>} : memref<8x32xf32, #tpu.memory_space<vmem>>, vector<8x32xf32>,
    return
  }
  func.func @transform_0(%arg0: i32) -> (i32, i32) {
    %c0_i32 = arith.constant 0 : i32
    %c0_i32_0 = arith.constant 0 : i32
    return %arg0, %c0_i32 : i32, i32
  }
  func.func @transform_1(%arg0: i32) -> (i32, i32) {
    %c0_i32 = arith.constant 0 : i32
    %c0_i32_0 = arith.constant 0 : i32
    %c0_i32_1 = arith.constant 0 : i32
    return %c0_i32, %c0_i32_0 : i32, i32
  }
  func.func @transform_2(%arg0: i32) -> (i32, i32) {
    %c0_i32 = arith.constant 0 : i32
    %c0_i32_0 = arith.constant 0 : i32
    %c0_i32_1 = arith.constant 0 : i32
    return %c0_i32, %c0_i32_0 : i32, i32
  }
  func.func @transform_3(%arg0: i32) -> (i32, i32) {
    %c0_i32 = arith.constant 0 : i32
    %c0_i32_0 = arith.constant 0 : i32
    %c0_i32_1 = arith.constant 0 : i32
    return %c0_i32, %c0_i32_0 : i32, i32
  }
  func.func @transform_4(%arg0: i32) -> (i32, i32) {
    %c0_i32 = arith.constant 0 : i32
    %c0_i32_0 = arith.constant 0 : i32
    %c0_i32_1 = arith.constant 0 : i32
    return %c0_i32, %c0_i32_0 : i32, i32
  }
  func.func @transform_5(%arg0: i32) -> (i32, i32) {
    %c0_i32 = arith.constant 0 : i32
    %c0_i32_0 = arith.constant 0 : i32
    return %arg0, %c0_i32 : i32, i32
  }
}

</mosaic_0001>

<llo_original>
// kernel: tpu_custom_call.1
$region0: #{tpu_custom_call.1}
  #allocation0 [shape = 'u32[]', space=smem, size = 0x4, offset = 0x4, fixed_abs, tag = 'smem constant byte address 0x4 - core index']
  #allocation1 [shape = 'u32[144,128]{1,0:T(1,128)}', space=vmem, size = 0x12000, scoped, tag = 'internal scratch']
  %s0 = inlined_call_operand.vmem [shape: f32[16,32], index: 0, kind: input, shape index: {}]
  %s1 = inlined_call_operand.vmem [shape: f32[32,64], index: 1, kind: input, shape index: {}]
  %s2 = inlined_call_operand.vmem [shape: f32[1,64], index: 2, kind: input, shape index: {}]
  %s3 = inlined_call_operand.vmem [shape: f32[64,32], index: 3, kind: input, shape index: {}]
  %s4 = inlined_call_operand.vmem [shape: f32[1,32], index: 4, kind: input, shape index: {}]
  %s5 = inlined_call_operand.hbm [shape: f32[16,32], index: 5, kind: output, shape index: {}]
  %s6 = sld [smem:[#allocation0]]
  $region53: #{tpu_custom_call.1} parent=0
    _
  %s8 = ssub.s32 1, %s6
  %s9 = scalar_select 0, %s8, %s6
  $region1: #{tpu_custom_call.1} parent=0
    #allocation2 [shape = 'u8[8192]{0}', space=vmem, size = 0x2000, scoped, tag = 'output window, operand 0']
    #allocation3 [shape = 's32[2]{0}', space=sflag, size = 0x8, scoped, tag = 'scoped memory for tpu_custom_call.1']
    %10 = vsyncpa [#allocation3], 0
    %s11 = scalar_lea.sflag [#allocation3], 1
    %12 = vsyncpa %s11, 0
    loop: start=0, step=1, limit=4
    $region2: #{tpu_custom_call.1} parent=1 // loop_pre_header
      _
    $region3: #{tpu_custom_call.1} parent=1 // loop_header
      %s14 = sphi 0, %s18
      %p15 = scmp.ge.s32.totalorder %s14, 4
      %s24 = sphi 0, %s26
      %s27 = sphi 0, %s24
      %s28 = sphi 0, %s27
      %s44 = sphi 0, %s28
      %s48 = sphi 0, %s48
      %s50 = sphi 0, %s48
      %s51 = sphi 0, %s50
      %s65 = sphi 0, %s51
      %s69 = sphi 0, %s69
      %s71 = sphi 0, %s69
      %s72 = sphi 0, %s71
      %s86 = sphi 0, %s72
      %s90 = sphi 0, %s90
      %s92 = sphi 0, %s90
      %s93 = sphi 0, %s92
      %s107 = sphi 0, %s93
      %s111 = sphi 0, %s111
      %s113 = sphi 0, %s111
      %s114 = sphi 0, %s113
      %s128 = sphi 0, %s114
      %s134 = sphi 0, %s136
      %s137 = sphi 0, %s134
      %s138 = sphi 0, %s137
      %s154 = sphi 0, %s138
    $region4: #{tpu_custom_call.1} parent=1 // loop_header_branch
      %17 = sbr.rel (%p15) target = $region8
    $region5: #{tpu_custom_call.1} parent=1 // loop_body
      %s19 = ssub.s32 %s14, 1
      %s20 = ssub.s32 %s14, 2
      %s21 = sadd.s32 %s14, 1
      %s22 = ssub.s32 %s14, %s21
      %p23 = scmp.eq.s32.totalorder %s22, 0
      %s25 = sadd.s32 %s24, 1
      %s26 = scalar_select %p23, %s24, %s25
      %p29 = pneg %p23
      %p30 = scmp.eq.s32.totalorder %s14, 1
      %p31 = por %p29, %p30
      %p32 = scmp.ne.s32.totalorder %s24, %s27
      %p33 = scmp.eq.s32.totalorder %s14, 0
      %p34 = por %p32, %p33
      %p35 = scmp.ne.s32.totalorder %s24, %s27
      %p36 = scmp.eq.s32.totalorder %s19, 1
      %p37 = por %p35, %p36
      %p38 = scmp.ne.s32.totalorder %s27, %s28
      %p39 = scmp.eq.s32.totalorder %s19, 0
      %p40 = por %p38, %p39
      %p41 = scmp.ne.s32.totalorder %s27, %s28
      %p42 = scmp.eq.s32.totalorder %s20, 1
      %p43 = por %p41, %p42
      %p45 = scmp.ne.s32.totalorder %s28, %s44
      %p46 = scmp.eq.s32.totalorder %s20, 0
      %p47 = por %p45, %p46
      %s49 = sadd.s32 %s48, 1
      %p52 = scmp.eq.s32.totalorder %s14, 1
      %p53 = scmp.ne.s32.totalorder %s48, %s50
      %p54 = scmp.eq.s32.totalorder %s14, 0
      %p55 = por %p53, %p54
      %p56 = scmp.ne.s32.totalorder %s48, %s50
      %p57 = scmp.eq.s32.totalorder %s19, 1
      %p58 = por %p56, %p57
      %p59 = scmp.ne.s32.totalorder %s50, %s51
      %p60 = scmp.eq.s32.totalorder %s19, 0
      %p61 = por %p59, %p60
      %p62 = scmp.ne.s32.totalorder %s50, %s51
      %p63 = scmp.eq.s32.totalorder %s20, 1
      %p64 = por %p62, %p63
      %p66 = scmp.ne.s32.totalorder %s51, %s65
      %p67 = scmp.eq.s32.totalorder %s20, 0
      %p68 = por %p66, %p67
      %s70 = sadd.s32 %s69, 1
      %p73 = scmp.eq.s32.totalorder %s14, 1
      %p74 = scmp.ne.s32.totalorder %s69, %s71
      %p75 = scmp.eq.s32.totalorder %s14, 0
      %p76 = por %p74, %p75
      %p77 = scmp.ne.s32.totalorder %s69, %s71
      %p78 = scmp.eq.s32.totalorder %s19, 1
      %p79 = por %p77, %p78
      %p80 = scmp.ne.s32.totalorder %s71, %s72
      %p81 = scmp.eq.s32.totalorder %s19, 0
      %p82 = por %p80, %p81
      %p83 = scmp.ne.s32.totalorder %s71, %s72
      %p84 = scmp.eq.s32.totalorder %s20, 1
      %p85 = por %p83, %p84
      %p87 = scmp.ne.s32.totalorder %s72, %s86
      %p88 = scmp.eq.s32.totalorder %s20, 0
      %p89 = por %p87, %p88
      %s91 = sadd.s32 %s90, 1
      %p94 = scmp.eq.s32.totalorder %s14, 1
      %p95 = scmp.ne.s32.totalorder %s90, %s92
      %p96 = scmp.eq.s32.totalorder %s14, 0
      %p97 = por %p95, %p96
      %p98 = scmp.ne.s32.totalorder %s90, %s92
      %p99 = scmp.eq.s32.totalorder %s19, 1
      %p100 = por %p98, %p99
      %p101 = scmp.ne.s32.totalorder %s92, %s93
      %p102 = scmp.eq.s32.totalorder %s19, 0
      %p103 = por %p101, %p102
      %p104 = scmp.ne.s32.totalorder %s92, %s93
      %p105 = scmp.eq.s32.totalorder %s20, 1
      %p106 = por %p104, %p105
      %p108 = scmp.ne.s32.totalorder %s93, %s107
      %p109 = scmp.eq.s32.totalorder %s20, 0
      %p110 = por %p108, %p109
      %s112 = sadd.s32 %s111, 1
      %p115 = scmp.eq.s32.totalorder %s14, 1
      %p116 = scmp.ne.s32.totalorder %s111, %s113
      %p117 = scmp.eq.s32.totalorder %s14, 0
      %p118 = por %p116, %p117
      %p119 = scmp.ne.s32.totalorder %s111, %s113
      %p120 = scmp.eq.s32.totalorder %s19, 1
      %p121 = por %p119, %p120
      %p122 = scmp.ne.s32.totalorder %s113, %s114
      %p123 = scmp.eq.s32.totalorder %s19, 0
      %p124 = por %p122, %p123
      %p125 = scmp.ne.s32.totalorder %s113, %s114
      %p126 = scmp.eq.s32.totalorder %s20, 1
      %p127 = por %p125, %p126
      %p129 = scmp.ne.s32.totalorder %s114, %s128
      %p130 = scmp.eq.s32.totalorder %s20, 0
      %p131 = por %p129, %p130
      %s132 = ssub.s32 %s14, %s21
      %p133 = scmp.eq.s32.totalorder %s132, 0
      %s135 = sadd.s32 %s134, 1
      %s136 = scalar_select %p133, %s134, %s135
      %p139 = pneg %p133
      %p140 = scmp.eq.s32.totalorder %s14, 1
      %p141 = por %p139, %p140
      %p142 = scmp.ne.s32.totalorder %s134, %s137
      %p143 = scmp.eq.s32.totalorder %s14, 0
      %p144 = por %p142, %p143
      %p145 = scmp.ne.s32.totalorder %s134, %s137
      %p146 = scmp.eq.s32.totalorder %s19, 1
      %p147 = por %p145, %p146
      %p148 = scmp.ne.s32.totalorder %s137, %s138
      %p149 = scmp.eq.s32.totalorder %s19, 0
      %p150 = por %p148, %p149
      %p151 = scmp.ne.s32.totalorder %s137, %s138
      %p152 = scmp.eq.s32.totalorder %s20, 1
      %p153 = por %p151, %p152
      %p155 = scmp.ne.s32.totalorder %s138, %s154
      %p156 = scmp.eq.s32.totalorder %s20, 0
      %p157 = por %p155, %p156
      %p158 = scmp.le.s32.totalorder 1, %s14
      %p159 = scmp.lt.s32.totalorder %s14, 3
      %p160 = pnand %p158, %p159
      %p161 = pneg %p160
      // Predicated region
      $region9: #{tpu_custom_call.1} parent=5 // pred_check
        _
      $region10: #{tpu_custom_call.1} parent=5 // pred_check_branch
        %163 = sbr.rel (%p160) target = $region12
      $region11: #{tpu_custom_call.1} parent=5 // pred_region
        %s164 = ssub.s32 %s14, 1
        // Predicated region
        $region13: #{tpu_custom_call.1} parent=11 // pred_check
          %p165 = pneg %p61
        $region14: #{tpu_custom_call.1} parent=11 // pred_check_branch
          %167 = sbr.rel (%p165) target = $region16
        $region15: #{tpu_custom_call.1} parent=11 // pred_region
          _
        $region16: #{tpu_custom_call.1} parent=11 // pred_fallthru
          _
        // Predicated region
        $region17: #{tpu_custom_call.1} parent=11 // pred_check
          %p168 = pneg %p82
        $region18: #{tpu_custom_call.1} parent=11 // pred_check_branch
          %170 = sbr.rel (%p168) target = $region20
        $region19: #{tpu_custom_call.1} parent=11 // pred_region
          _
        $region20: #{tpu_custom_call.1} parent=11 // pred_fallthru
          _
        // Predicated region
        $region21: #{tpu_custom_call.1} parent=11 // pred_check
          %p171 = pneg %p103
        $region22: #{tpu_custom_call.1} parent=11 // pred_check_branch
          %173 = sbr.rel (%p171) target = $region24
        $region23: #{tpu_custom_call.1} parent=11 // pred_region
          _
        $region24: #{tpu_custom_call.1} parent=11 // pred_fallthru
          _
        // Predicated region
        $region25: #{tpu_custom_call.1} parent=11 // pred_check
          %p174 = pneg %p124
        $region26: #{tpu_custom_call.1} parent=11 // pred_check_branch
          %176 = sbr.rel (%p174) target = $region28
        $region27: #{tpu_custom_call.1} parent=11 // pred_region
          _
        $region28: #{tpu_custom_call.1} parent=11 // pred_fallthru
          _
      $region12: #{tpu_custom_call.1} parent=5 // pred_fallthru
        _
      %p177 = scmp.lt.s32.totalorder %s14, 2
      // Predicated region
      $region29: #{tpu_custom_call.1} parent=5 // pred_check
        %p178 = pneg %p177
      $region30: #{tpu_custom_call.1} parent=5 // pred_check_branch
        %180 = sbr.rel (%p178) target = $region32
      $region31: #{tpu_custom_call.1} parent=5 // pred_region
        // Predicated region
        $region33: #{tpu_custom_call.1} parent=31 // pred_check
          %p181 = pneg %p34
        $region34: #{tpu_custom_call.1} parent=31 // pred_check_branch
          %183 = sbr.rel (%p181) target = $region36
        $region35: #{tpu_custom_call.1} parent=31 // pred_region
          %p184 = scmp.lt.s32.totalorder %s14, 1
          %s185 = scalar_select %p184, %s14, 1
          %s186 = smul.addr %s185, 8
          %s187 = scalar_lea.vmem %s0, %s186
        $region36: #{tpu_custom_call.1} parent=31 // pred_fallthru
          _
      $region32: #{tpu_custom_call.1} parent=5 // pred_fallthru
        _
      %p188 = scmp.le.s32.totalorder 1, %s14
      %p189 = scmp.lt.s32.totalorder %s14, 3
      %p190 = pnand %p188, %p189
      %p191 = pneg %p190
      // Predicated region
      $region37: #{tpu_custom_call.1} parent=5 // pred_check
        _
      $region38: #{tpu_custom_call.1} parent=5 // pred_check_branch
        %193 = sbr.rel (%p190) target = $region40
      $region39: #{tpu_custom_call.1} parent=5 // pred_region
        %s194 = ssub.s32 %s14, 1
        %p195 = scmp.lt.s32.totalorder %s19, 1
        %s196 = scalar_select %p195, %s19, 1
        %s197 = smul.addr %s196, 8
        %s198 = scalar_lea.vmem %s0, %s197
        %p199 = pneg %p40
        %p200 = pneg %p37
        %p201 = pneg %p61
        %p202 = pneg %p58
        %p203 = pneg %p82
        %p204 = pneg %p79
        %p205 = pneg %p103
        %p206 = pneg %p100
        %p207 = pneg %p124
        %p208 = pneg %p121
        %p209 = pneg %p150
        %p210 = pneg %p147
        %s211 = sand.u32 %s137, 1
        %s212 = scalar_lea.sflag [#allocation3], %s211
        %s213 = sand.u32 %s137, 1
        %s214 = smul.addr %s213, 8
        %s215 = scalar_lea.vmem [#allocation2], %s214
        %p216 = scmp.lt.s32.totalorder %s19, 1
        %s217 = scalar_select %p216, %s19, 1
        %s218 = smul.addr %s217, 8
        %s219 = scalar_lea.vmem %s0, %s218
        %v220 = vld [vmem:[%s219] sm:$0xff]
        %v221 = vld [vmem:[%s1] sm:$0xff]
        %v222 = vld [vmem:[%s1 + $0x8] sm:$0xff]
        %v223 = vld [vmem:[%s1 + $0x10] sm:$0xff]
        %v224 = vld [vmem:[%s1 + $0x18] sm:$0xff]
        %v225 = vld [vmem:[%s2] sm:$0x1]
        %v227 = vlaneseq
        %v228 = vshrl.u32 %v227, 7
        %v229 = vsub.s32 0, %v228
        %v230 = vrot.slane %v225, %v229
        %vm232 = vcmask 261120
        %v234 = vsel %vm232, %v220, 0
        %236 = vmatprep.subr.mxu0 0.0
        %v237 = vand.u32 %v221, 4294901760
        %238 = vmatpush1.msra.mxu0 %v237
        %239 = vmatprep.subr.mxu0 0.0
        %v240 = vand.u32 %v222, 4294901760
        %241 = vmatpush1.msra.mxu0 %v240
        %242 = vmatprep.subr.mxu0 0.0
        %v243 = vand.u32 %v223, 4294901760
        %244 = vmatpush1.msra.mxu0 %v243
        %245 = vmatprep.subr.mxu0 0.0
        %v246 = vand.u32 %v224, 4294901760
        %247 = vmatpush1.msra.mxu0 %v246
        %248 = vmatprep.subr.mxu0 0.0
        %249 = vmatpush1.msra.mxu0 0.0
        %250 = vmatprep.subr.mxu0 0.0
        %251 = vmatpush1.msra.mxu0 0.0
        %252 = vmatprep.subr.mxu0 0.0
        %253 = vmatpush1.msra.mxu0 0.0
        %254 = vmatprep.subr.mxu0 0.0
        %255 = vmatpush1.msra.mxu0 0.0
        %256 = vmatprep.subr.mxu0 0.0
        %257 = vmatpush1.msra.mxu0 0.0
        %258 = vmatprep.subr.mxu0 0.0
        %259 = vmatpush1.msra.mxu0 0.0
        %260 = vmatprep.subr.mxu0 0.0
        %261 = vmatpush1.msra.mxu0 0.0
        %262 = vmatprep.subr.mxu0 0.0
        %263 = vmatpush1.msra.mxu0 0.0
        %264 = vmatprep.subr.mxu0 0.0
        %265 = vmatpush1.msra.mxu0 0.0
        %266 = vmatprep.subr.mxu0 0.0
        %267 = vmatpush1.msra.mxu0 0.0
        %268 = vmatprep.subr.mxu0 0.0
        %269 = vmatpush1.msra.mxu0 0.0
        %270 = vmatprep.subr.mxu0 0.0
        %271 = vmatpush1.msra.mxu0 0.0
        %272 = vmatprep.subr.mxu0 0.0
        %273 = vmatpush1.msra.mxu0 0.0
        %274 = vmatprep.subr.mxu0 0.0
        %275 = vmatpush1.msra.mxu0 0.0
        %276 = vmatprep.subr.mxu0 0.0
        %277 = vmatpush1.msra.mxu0 0.0
        %278 = vmatprep.subr.mxu0 0.0
        %279 = vmatpush1.msra.mxu0 0.0
        %280 = vmatprep.subr.mxu0 0.0
        %281 = vmatpush1.msra.mxu0 0.0
        %282 = vmatprep.subr.mxu0 0.0
        %283 = vmatpush1.msra.mxu0 0.0
        %284 = vmatprep.subr.mxu0 0.0
        %285 = vmatpush1.msra.mxu0 0.0
        %286 = vmatprep.subr.mxu0 0.0
        %287 = vmatpush1.msra.mxu0 0.0
        %288 = vmatprep.subr.mxu0 0.0
        %289 = vmatpush1.msra.mxu0 0.0
        %290 = vmatprep.subr.mxu0 0.0
        %291 = vmatpush1.msra.mxu0 0.0
        %292 = vmatprep.subr.mxu0 0.0
        %293 = vmatpush1.msra.mxu0 0.0
        %294 = vmatprep.subr.mxu0 0.0
        %295 = vmatpush1.msra.mxu0 0.0
        %296 = vmatprep.subr.mxu0 0.0
        %297 = vmatpush1.msra.mxu0 0.0
        %298 = vmatprep.subr.mxu0 0.0
        %299 = vmatpush1.msra.mxu0 0.0
        %300 = vmatprep.subr.mxu0 0.0
        %301 = vmatpush1.msra.mxu0 0.0
        %302 = vmatprep.subr.mxu0 0.0
        %303 = vmatpush1.msra.mxu0 0.0
        %304 = vmatprep.mubr.f32.mxu0 0.0
        %v305 = vand.u32 %v234, 4294901760
        %v306 = vsub.f32 %v234, %v305
        %v307 = vand.u32 %v306, 4294901760
        %v308 = vsub.f32 %v306, %v307
        %v309 = vand.u32 %v308, 4294901760
        %310 = vmatmul.mubr.f32.gmra.mrb[0].mxu0 %v309
        %v311 = vpop.f32.mrb[0].mxu0
        %v312 = vadd.f32 %v230, %v311
        %v313 = vpop.f32.mrb[0].mxu0
        %314 = vdwg.mxu0
        %315 = vmatprep.subr.mxu0 0.0
        %v316 = vand.u32 %v221, 4294901760
        %v317 = vsub.f32 %v221, %v316
        %v318 = vand.u32 %v317, 4294901760
        %v319 = vsub.f32 %v317, %v318
        %v320 = vand.u32 %v319, 4294901760
        %321 = vmatpush1.msra.mxu0 %v320
        %322 = vmatprep.subr.mxu0 0.0
        %v323 = vand.u32 %v222, 4294901760
        %v324 = vsub.f32 %v222, %v323
        %v325 = vand.u32 %v324, 4294901760
        %v326 = vsub.f32 %v324, %v325
        %v327 = vand.u32 %v326, 4294901760
        %328 = vmatpush1.msra.mxu0 %v327
        %329 = vmatprep.subr.mxu0 0.0
        %v330 = vand.u32 %v223, 4294901760
        %v331 = vsub.f32 %v223, %v330
        %v332 = vand.u32 %v331, 4294901760
        %v333 = vsub.f32 %v331, %v332
        %v334 = vand.u32 %v333, 4294901760
        %335 = vmatpush1.msra.mxu0 %v334
        %336 = vmatprep.subr.mxu0 0.0
        %v337 = vand.u32 %v224, 4294901760
        %v338 = vsub.f32 %v224, %v337
        %v339 = vand.u32 %v338, 4294901760
        %v340 = vsub.f32 %v338, %v339
        %v341 = vand.u32 %v340, 4294901760
        %342 = vmatpush1.msra.mxu0 %v341
        %343 = vmatprep.subr.mxu0 0.0
        %344 = vmatpush1.msra.mxu0 0.0
        %345 = vmatprep.subr.mxu0 0.0
        %346 = vmatpush1.msra.mxu0 0.0
        %347 = vmatprep.subr.mxu0 0.0
        %348 = vmatpush1.msra.mxu0 0.0
        %349 = vmatprep.subr.mxu0 0.0
        %350 = vmatpush1.msra.mxu0 0.0
        %351 = vmatprep.subr.mxu0 0.0
        %352 = vmatpush1.msra.mxu0 0.0
        %353 = vmatprep.subr.mxu0 0.0
        %354 = vmatpush1.msra.mxu0 0.0
        %355 = vmatprep.subr.mxu0 0.0
        %356 = vmatpush1.msra.mxu0 0.0
        %357 = vmatprep.subr.mxu0 0.0
        %358 = vmatpush1.msra.mxu0 0.0
        %359 = vmatprep.subr.mxu0 0.0
        %360 = vmatpush1.msra.mxu0 0.0
        %361 = vmatprep.subr.mxu0 0.0
        %362 = vmatpush1.msra.mxu0 0.0
        %363 = vmatprep.subr.mxu0 0.0
        %364 = vmatpush1.msra.mxu0 0.0
        %365 = vmatprep.subr.mxu0 0.0
        %366 = vmatpush1.msra.mxu0 0.0
        %367 = vmatprep.subr.mxu0 0.0
        %368 = vmatpush1.msra.mxu0 0.0
        %369 = vmatprep.subr.mxu0 0.0
        %370 = vmatpush1.msra.mxu0 0.0
        %371 = vmatprep.subr.mxu0 0.0
        %372 = vmatpush1.msra.mxu0 0.0
        %373 = vmatprep.subr.mxu0 0.0
        %374 = vmatpush1.msra.mxu0 0.0
        %375 = vmatprep.subr.mxu0 0.0
        %376 = vmatpush1.msra.mxu0 0.0
        %377 = vmatprep.subr.mxu0 0.0
        %378 = vmatpush1.msra.mxu0 0.0
        %379 = vmatprep.subr.mxu0 0.0
        %380 = vmatpush1.msra.mxu0 0.0
        %381 = vmatprep.subr.mxu0 0.0
        %382 = vmatpush1.msra.mxu0 0.0
        %383 = vmatprep.subr.mxu0 0.0
        %384 = vmatpush1.msra.mxu0 0.0
        %385 = vmatprep.subr.mxu0 0.0
        %386 = vmatpush1.msra.mxu0 0.0
        %387 = vmatprep.subr.mxu0 0.0
        %388 = vmatpush1.msra.mxu0 0.0
        %389 = vmatprep.subr.mxu0 0.0
        %390 = vmatpush1.msra.mxu0 0.0
        %391 = vmatprep.subr.mxu0 0.0
        %392 = vmatpush1.msra.mxu0 0.0
        %393 = vmatprep.subr.mxu0 0.0
        %394 = vmatpush1.msra.mxu0 0.0
        %395 = vmatprep.subr.mxu0 0.0
        %396 = vmatpush1.msra.mxu0 0.0
        %397 = vmatprep.subr.mxu0 0.0
        %398 = vmatpush1.msra.mxu0 0.0
        %399 = vmatprep.mubr.f32.mxu0 0.0
        %v400 = vand.u32 %v234, 4294901760
        %401 = vmatmul.mubr.f32.gmra.mrb[0].mxu0 %v400
        %v402 = vpop.f32.mrb[0].mxu0
        %v403 = vadd.f32 %v312, %v402
        %v404 = vpop.f32.mrb[0].mxu0
        %405 = vdwg.mxu0
        %406 = vmatprep.subr.mxu0 0.0
        %v407 = vand.u32 %v221, 4294901760
        %v408 = vsub.f32 %v221, %v407
        %409 = vmatpush1.msra.mxu0 %v408
        %410 = vmatprep.subr.mxu0 0.0
        %v411 = vand.u32 %v222, 4294901760
        %v412 = vsub.f32 %v222, %v411
        %413 = vmatpush1.msra.mxu0 %v412
        %414 = vmatprep.subr.mxu0 0.0
        %v415 = vand.u32 %v223, 4294901760
        %v416 = vsub.f32 %v223, %v415
        %417 = vmatpush1.msra.mxu0 %v416
        %418 = vmatprep.subr.mxu0 0.0
        %v419 = vand.u32 %v224, 4294901760
        %v420 = vsub.f32 %v224, %v419
        %421 = vmatpush1.msra.mxu0 %v420
        %422 = vmatprep.subr.mxu0 0.0
        %423 = vmatpush1.msra.mxu0 0.0
        %424 = vmatprep.subr.mxu0 0.0
        %425 = vmatpush1.msra.mxu0 0.0
        %426 = vmatprep.subr.mxu0 0.0
        %427 = vmatpush1.msra.mxu0 0.0
        %428 = vmatprep.subr.mxu0 0.0
        %429 = vmatpush1.msra.mxu0 0.0
        %430 = vmatprep.subr.mxu0 0.0
        %431 = vmatpush1.msra.mxu0 0.0
        %432 = vmatprep.subr.mxu0 0.0
        %433 = vmatpush1.msra.mxu0 0.0
        %434 = vmatprep.subr.mxu0 0.0
        %435 = vmatpush1.msra.mxu0 0.0
        %436 = vmatprep.subr.mxu0 0.0
        %437 = vmatpush1.msra.mxu0 0.0
        %438 = vmatprep.subr.mxu0 0.0
        %439 = vmatpush1.msra.mxu0 0.0
        %440 = vmatprep.subr.mxu0 0.0
        %441 = vmatpush1.msra.mxu0 0.0
        %442 = vmatprep.subr.mxu0 0.0
        %443 = vmatpush1.msra.mxu0 0.0
        %444 = vmatprep.subr.mxu0 0.0
        %445 = vmatpush1.msra.mxu0 0.0
        %446 = vmatprep.subr.mxu0 0.0
        %447 = vmatpush1.msra.mxu0 0.0
        %448 = vmatprep.subr.mxu0 0.0
        %449 = vmatpush1.msra.mxu0 0.0
        %450 = vmatprep.subr.mxu0 0.0
        %451 = vmatpush1.msra.mxu0 0.0
        %452 = vmatprep.subr.mxu0 0.0
        %453 = vmatpush1.msra.mxu0 0.0
        %454 = vmatprep.subr.mxu0 0.0
        %455 = vmatpush1.msra.mxu0 0.0
        %456 = vmatprep.subr.mxu0 0.0
        %457 = vmatpush1.msra.mxu0 0.0
        %458 = vmatprep.subr.mxu0 0.0
        %459 = vmatpush1.msra.mxu0 0.0
        %460 = vmatprep.subr.mxu0 0.0
        %461 = vmatpush1.msra.mxu0 0.0
        %462 = vmatprep.subr.mxu0 0.0
        %463 = vmatpush1.msra.mxu0 0.0
        %464 = vmatprep.subr.mxu0 0.0
        %465 = vmatpush1.msra.mxu0 0.0
        %466 = vmatprep.subr.mxu0 0.0
        %467 = vmatpush1.msra.mxu0 0.0
        %468 = vmatprep.subr.mxu0 0.0
        %469 = vmatpush1.msra.mxu0 0.0
        %470 = vmatprep.subr.mxu0 0.0
        %471 = vmatpush1.msra.mxu0 0.0
        %472 = vmatprep.subr.mxu0 0.0
        %473 = vmatpush1.msra.mxu0 0.0
        %474 = vmatprep.subr.mxu0 0.0
        %475 = vmatpush1.msra.mxu0 0.0
        %476 = vmatprep.subr.mxu0 0.0
        %477 = vmatpush1.msra.mxu0 0.0
        %478 = vmatprep.mubr.f32.mxu0 0.0
        %v479 = vand.u32 %v234, 4294901760
        %v480 = vsub.f32 %v234, %v479
        %481 = vmatmul.mubr.f32.gmra.mrb[0].mxu0 %v480
        %v482 = vpop.f32.mrb[0].mxu0
        %v483 = vadd.f32 %v403, %v482
        %v484 = vpop.f32.mrb[0].mxu0
        %485 = vdwg.mxu0
        %486 = vmatprep.subr.mxu0 0.0
        %v487 = vand.u32 %v221, 4294901760
        %488 = vmatpush1.msra.mxu0 %v487
        %489 = vmatprep.subr.mxu0 0.0
        %v490 = vand.u32 %v222, 4294901760
        %491 = vmatpush1.msra.mxu0 %v490
        %492 = vmatprep.subr.mxu0 0.0
        %v493 = vand.u32 %v223, 4294901760
        %494 = vmatpush1.msra.mxu0 %v493
        %495 = vmatprep.subr.mxu0 0.0
        %v496 = vand.u32 %v224, 4294901760
        %497 = vmatpush1.msra.mxu0 %v496
        %498 = vmatprep.subr.mxu0 0.0
        %499 = vmatpush1.msra.mxu0 0.0
        %500 = vmatprep.subr.mxu0 0.0
        %501 = vmatpush1.msra.mxu0 0.0
        %502 = vmatprep.subr.mxu0 0.0
        %503 = vmatpush1.msra.mxu0 0.0
        %504 = vmatprep.subr.mxu0 0.0
        %505 = vmatpush1.msra.mxu0 0.0
        %506 = vmatprep.subr.mxu0 0.0
        %507 = vmatpush1.msra.mxu0 0.0
        %508 = vmatprep.subr.mxu0 0.0
        %509 = vmatpush1.msra.mxu0 0.0
        %510 = vmatprep.subr.mxu0 0.0
        %511 = vmatpush1.msra.mxu0 0.0
        %512 = vmatprep.subr.mxu0 0.0
        %513 = vmatpush1.msra.mxu0 0.0
        %514 = vmatprep.subr.mxu0 0.0
        %515 = vmatpush1.msra.mxu0 0.0
        %516 = vmatprep.subr.mxu0 0.0
        %517 = vmatpush1.msra.mxu0 0.0
        %518 = vmatprep.subr.mxu0 0.0
        %519 = vmatpush1.msra.mxu0 0.0
        %520 = vmatprep.subr.mxu0 0.0
        %521 = vmatpush1.msra.mxu0 0.0
        %522 = vmatprep.subr.mxu0 0.0
        %523 = vmatpush1.msra.mxu0 0.0
        %524 = vmatprep.subr.mxu0 0.0
        %525 = vmatpush1.msra.mxu0 0.0
        %526 = vmatprep.subr.mxu0 0.0
        %527 = vmatpush1.msra.mxu0 0.0
        %528 = vmatprep.subr.mxu0 0.0
        %529 = vmatpush1.msra.mxu0 0.0
        %530 = vmatprep.subr.mxu0 0.0
        %531 = vmatpush1.msra.mxu0 0.0
        %532 = vmatprep.subr.mxu0 0.0
        %533 = vmatpush1.msra.mxu0 0.0
        %534 = vmatprep.subr.mxu0 0.0
        %535 = vmatpush1.msra.mxu0 0.0
        %536 = vmatprep.subr.mxu0 0.0
        %537 = vmatpush1.msra.mxu0 0.0
        %538 = vmatprep.subr.mxu0 0.0
        %539 = vmatpush1.msra.mxu0 0.0
        %540 = vmatprep.subr.mxu0 0.0
        %541 = vmatpush1.msra.mxu0 0.0
        %542 = vmatprep.subr.mxu0 0.0
        %543 = vmatpush1.msra.mxu0 0.0
        %544 = vmatprep.subr.mxu0 0.0
        %545 = vmatpush1.msra.mxu0 0.0
        %546 = vmatprep.subr.mxu0 0.0
        %547 = vmatpush1.msra.mxu0 0.0
        %548 = vmatprep.subr.mxu0 0.0
        %549 = vmatpush1.msra.mxu0 0.0
        %550 = vmatprep.subr.mxu0 0.0
        %551 = vmatpush1.msra.mxu0 0.0
        %552 = vmatprep.subr.mxu0 0.0
        %553 = vmatpush1.msra.mxu0 0.0
        %554 = vmatprep.mubr.f32.mxu0 0.0
        %v555 = vand.u32 %v234, 4294901760
        %v556 = vsub.f32 %v234, %v555
        %v557 = vand.u32 %v556, 4294901760
        %558 = vmatmul.mubr.f32.gmra.mrb[0].mxu0 %v557
        %v559 = vpop.f32.mrb[0].mxu0
        %v560 = vadd.f32 %v483, %v559
        %v561 = vpop.f32.mrb[0].mxu0
        %562 = vdwg.mxu0
        %563 = vmatprep.subr.mxu0 0.0
        %v564 = vand.u32 %v221, 4294901760
        %v565 = vsub.f32 %v221, %v564
        %v566 = vand.u32 %v565, 4294901760
        %567 = vmatpush1.msra.mxu0 %v566
        %568 = vmatprep.subr.mxu0 0.0
        %v569 = vand.u32 %v222, 4294901760
        %v570 = vsub.f32 %v222, %v569
        %v571 = vand.u32 %v570, 4294901760
        %572 = vmatpush1.msra.mxu0 %v571
        %573 = vmatprep.subr.mxu0 0.0
        %v574 = vand.u32 %v223, 4294901760
        %v575 = vsub.f32 %v223, %v574
        %v576 = vand.u32 %v575, 4294901760
        %577 = vmatpush1.msra.mxu0 %v576
        %578 = vmatprep.subr.mxu0 0.0
        %v579 = vand.u32 %v224, 4294901760
        %v580 = vsub.f32 %v224, %v579
        %v581 = vand.u32 %v580, 4294901760
        %582 = vmatpush1.msra.mxu0 %v581
        %583 = vmatprep.subr.mxu0 0.0
        %584 = vmatpush1.msra.mxu0 0.0
        %585 = vmatprep.subr.mxu0 0.0
        %586 = vmatpush1.msra.mxu0 0.0
        %587 = vmatprep.subr.mxu0 0.0
        %588 = vmatpush1.msra.mxu0 0.0
        %589 = vmatprep.subr.mxu0 0.0
        %590 = vmatpush1.msra.mxu0 0.0
        %591 = vmatprep.subr.mxu0 0.0
        %592 = vmatpush1.msra.mxu0 0.0
        %593 = vmatprep.subr.mxu0 0.0
        %594 = vmatpush1.msra.mxu0 0.0
        %595 = vmatprep.subr.mxu0 0.0
        %596 = vmatpush1.msra.mxu0 0.0
        %597 = vmatprep.subr.mxu0 0.0
        %598 = vmatpush1.msra.mxu0 0.0
        %599 = vmatprep.subr.mxu0 0.0
        %600 = vmatpush1.msra.mxu0 0.0
        %601 = vmatprep.subr.mxu0 0.0
        %602 = vmatpush1.msra.mxu0 0.0
        %603 = vmatprep.subr.mxu0 0.0
        %604 = vmatpush1.msra.mxu0 0.0
        %605 = vmatprep.subr.mxu0 0.0
        %606 = vmatpush1.msra.mxu0 0.0
        %607 = vmatprep.subr.mxu0 0.0
        %608 = vmatpush1.msra.mxu0 0.0
        %609 = vmatprep.subr.mxu0 0.0
        %610 = vmatpush1.msra.mxu0 0.0
        %611 = vmatprep.subr.mxu0 0.0
        %612 = vmatpush1.msra.mxu0 0.0
        %613 = vmatprep.subr.mxu0 0.0
        %614 = vmatpush1.msra.mxu0 0.0
        %615 = vmatprep.subr.mxu0 0.0
        %616 = vmatpush1.msra.mxu0 0.0
        %617 = vmatprep.subr.mxu0 0.0
        %618 = vmatpush1.msra.mxu0 0.0
        %619 = vmatprep.subr.mxu0 0.0
        %620 = vmatpush1.msra.mxu0 0.0
        %621 = vmatprep.subr.mxu0 0.0
        %622 = vmatpush1.msra.mxu0 0.0
        %623 = vmatprep.subr.mxu0 0.0
        %624 = vmatpush1.msra.mxu0 0.0
        %625 = vmatprep.subr.mxu0 0.0
        %626 = vmatpush1.msra.mxu0 0.0
        %627 = vmatprep.subr.mxu0 0.0
        %628 = vmatpush1.msra.mxu0 0.0
        %629 = vmatprep.subr.mxu0 0.0
        %630 = vmatpush1.msra.mxu0 0.0
        %631 = vmatprep.subr.mxu0 0.0
        %632 = vmatpush1.msra.mxu0 0.0
        %633 = vmatprep.subr.mxu0 0.0
        %634 = vmatpush1.msra.mxu0 0.0
        %635 = vmatprep.subr.mxu0 0.0
        %636 = vmatpush1.msra.mxu0 0.0
        %637 = vmatprep.subr.mxu0 0.0
        %638 = vmatpush1.msra.mxu0 0.0
        %639 = vmatprep.mubr.f32.mxu0 0.0
        %v640 = vand.u32 %v234, 4294901760
        %641 = vmatmul.mubr.f32.gmra.mrb[0].mxu0 %v640
        %v642 = vpop.f32.mrb[0].mxu0
        %v643 = vadd.f32 %v560, %v642
        %v644 = vpop.f32.mrb[0].mxu0
        %645 = vdwg.mxu0
        %646 = vmatprep.subr.mxu0 0.0
        %v647 = vand.u32 %v221, 4294901760
        %648 = vmatpush1.msra.mxu0 %v647
        %649 = vmatprep.subr.mxu0 0.0
        %v650 = vand.u32 %v222, 4294901760
        %651 = vmatpush1.msra.mxu0 %v650
        %652 = vmatprep.subr.mxu0 0.0
        %v653 = vand.u32 %v223, 4294901760
        %654 = vmatpush1.msra.mxu0 %v653
        %655 = vmatprep.subr.mxu0 0.0
        %v656 = vand.u32 %v224, 4294901760
        %657 = vmatpush1.msra.mxu0 %v656
        %658 = vmatprep.subr.mxu0 0.0
        %659 = vmatpush1.msra.mxu0 0.0
        %660 = vmatprep.subr.mxu0 0.0
        %661 = vmatpush1.msra.mxu0 0.0
        %662 = vmatprep.subr.mxu0 0.0
        %663 = vmatpush1.msra.mxu0 0.0
        %664 = vmatprep.subr.mxu0 0.0
        %665 = vmatpush1.msra.mxu0 0.0
        %666 = vmatprep.subr.mxu0 0.0
        %667 = vmatpush1.msra.mxu0 0.0
        %668 = vmatprep.subr.mxu0 0.0
        %669 = vmatpush1.msra.mxu0 0.0
        %670 = vmatprep.subr.mxu0 0.0
        %671 = vmatpush1.msra.mxu0 0.0
        %672 = vmatprep.subr.mxu0 0.0
        %673 = vmatpush1.msra.mxu0 0.0
        %674 = vmatprep.subr.mxu0 0.0
        %675 = vmatpush1.msra.mxu0 0.0
        %676 = vmatprep.subr.mxu0 0.0
        %677 = vmatpush1.msra.mxu0 0.0
        %678 = vmatprep.subr.mxu0 0.0
        %679 = vmatpush1.msra.mxu0 0.0
        %680 = vmatprep.subr.mxu0 0.0
        %681 = vmatpush1.msra.mxu0 0.0
        %682 = vmatprep.subr.mxu0 0.0
        %683 = vmatpush1.msra.mxu0 0.0
        %684 = vmatprep.subr.mxu0 0.0
        %685 = vmatpush1.msra.mxu0 0.0
        %686 = vmatprep.subr.mxu0 0.0
        %687 = vmatpush1.msra.mxu0 0.0
        %688 = vmatprep.subr.mxu0 0.0
        %689 = vmatpush1.msra.mxu0 0.0
        %690 = vmatprep.subr.mxu0 0.0
        %691 = vmatpush1.msra.mxu0 0.0
        %692 = vmatprep.subr.mxu0 0.0
        %693 = vmatpush1.msra.mxu0 0.0
        %694 = vmatprep.subr.mxu0 0.0
        %695 = vmatpush1.msra.mxu0 0.0
        %696 = vmatprep.subr.mxu0 0.0
        %697 = vmatpush1.msra.mxu0 0.0
        %698 = vmatprep.subr.mxu0 0.0
        %699 = vmatpush1.msra.mxu0 0.0
        %700 = vmatprep.subr.mxu0 0.0
        %701 = vmatpush1.msra.mxu0 0.0
        %702 = vmatprep.subr.mxu0 0.0
        %703 = vmatpush1.msra.mxu0 0.0
        %704 = vmatprep.subr.mxu0 0.0
        %705 = vmatpush1.msra.mxu0 0.0
        %706 = vmatprep.subr.mxu0 0.0
        %707 = vmatpush1.msra.mxu0 0.0
        %708 = vmatprep.subr.mxu0 0.0
        %709 = vmatpush1.msra.mxu0 0.0
        %710 = vmatprep.subr.mxu0 0.0
        %711 = vmatpush1.msra.mxu0 0.0
        %712 = vmatprep.subr.mxu0 0.0
        %713 = vmatpush1.msra.mxu0 0.0
        %714 = vmatprep.mubr.f32.mxu0 0.0
        %v715 = vand.u32 %v234, 4294901760
        %716 = vmatmul.mubr.f32.gmra.mrb[0].mxu0 %v715
        %v717 = vpop.f32.mrb[0].mxu0
        %v718 = vadd.f32 %v643, %v717
        %v719 = vpop.f32.mrb[0].mxu0
        %720 = vdwg.mxu0
        %v721 = vmax.f32 %v718, 0.0
        %v722 = vld [vmem:[%s3] sm:$0xff]
        %v723 = vld [vmem:[%s3 + $0x8] sm:$0xff]
        %v724 = vld [vmem:[%s3 + $0x10] sm:$0xff]
        %v725 = vld [vmem:[%s3 + $0x18] sm:$0xff]
        %v726 = vld [vmem:[%s3 + $0x20] sm:$0xff]
        %v727 = vld [vmem:[%s3 + $0x28] sm:$0xff]
        %v728 = vld [vmem:[%s3 + $0x30] sm:$0xff]
        %v729 = vld [vmem:[%s3 + $0x38] sm:$0xff]
        %v730 = vld [vmem:[%s4] sm:$0x1]
        %v732 = vlaneseq
        %v733 = vshrl.u32 %v732, 7
        %v734 = vsub.s32 0, %v733
        %v735 = vrot.slane %v730, %v734
        %vm737 = vcmask 523264
        %v739 = vsel %vm737, %v721, 0
        %741 = vmatprep.subr.mxu0 0.0
        %v742 = vand.u32 %v722, 4294901760
        %743 = vmatpush1.msra.mxu0 %v742
        %744 = vmatprep.subr.mxu0 0.0
        %v745 = vand.u32 %v723, 4294901760
        %746 = vmatpush1.msra.mxu0 %v745
        %747 = vmatprep.subr.mxu0 0.0
        %v748 = vand.u32 %v724, 4294901760
        %749 = vmatpush1.msra.mxu0 %v748
        %750 = vmatprep.subr.mxu0 0.0
        %v751 = vand.u32 %v725, 4294901760
        %752 = vmatpush1.msra.mxu0 %v751
        %753 = vmatprep.subr.mxu0 0.0
        %v754 = vand.u32 %v726, 4294901760
        %755 = vmatpush1.msra.mxu0 %v754
        %756 = vmatprep.subr.mxu0 0.0
        %v757 = vand.u32 %v727, 4294901760
        %758 = vmatpush1.msra.mxu0 %v757
        %759 = vmatprep.subr.mxu0 0.0
        %v760 = vand.u32 %v728, 4294901760
        %761 = vmatpush1.msra.mxu0 %v760
        %762 = vmatprep.subr.mxu0 0.0
        %v763 = vand.u32 %v729, 4294901760
        %764 = vmatpush1.msra.mxu0 %v763
        %765 = vmatprep.subr.mxu0 0.0
        %766 = vmatpush1.msra.mxu0 0.0
        %767 = vmatprep.subr.mxu0 0.0
        %768 = vmatpush1.msra.mxu0 0.0
        %769 = vmatprep.subr.mxu0 0.0
        %770 = vmatpush1.msra.mxu0 0.0
        %771 = vmatprep.subr.mxu0 0.0
        %772 = vmatpush1.msra.mxu0 0.0
        %773 = vmatprep.subr.mxu0 0.0
        %774 = vmatpush1.msra.mxu0 0.0
        %775 = vmatprep.subr.mxu0 0.0
        %776 = vmatpush1.msra.mxu0 0.0
        %777 = vmatprep.subr.mxu0 0.0
        %778 = vmatpush1.msra.mxu0 0.0
        %779 = vmatprep.subr.mxu0 0.0
        %780 = vmatpush1.msra.mxu0 0.0
        %781 = vmatprep.subr.mxu0 0.0
        %782 = vmatpush1.msra.mxu0 0.0
        %783 = vmatprep.subr.mxu0 0.0
        %784 = vmatpush1.msra.mxu0 0.0
        %785 = vmatprep.subr.mxu0 0.0
        %786 = vmatpush1.msra.mxu0 0.0
        %787 = vmatprep.subr.mxu0 0.0
        %788 = vmatpush1.msra.mxu0 0.0
        %789 = vmatprep.subr.mxu0 0.0
        %790 = vmatpush1.msra.mxu0 0.0
        %791 = vmatprep.subr.mxu0 0.0
        %792 = vmatpush1.msra.mxu0 0.0
        %793 = vmatprep.subr.mxu0 0.0
        %794 = vmatpush1.msra.mxu0 0.0
        %795 = vmatprep.subr.mxu0 0.0
        %796 = vmatpush1.msra.mxu0 0.0
        %797 = vmatprep.subr.mxu0 0.0
        %798 = vmatpush1.msra.mxu0 0.0
        %799 = vmatprep.subr.mxu0 0.0
        %800 = vmatpush1.msra.mxu0 0.0
        %801 = vmatprep.subr.mxu0 0.0
        %802 = vmatpush1.msra.mxu0 0.0
        %803 = vmatprep.subr.mxu0 0.0
        %804 = vmatpush1.msra.mxu0 0.0
        %805 = vmatprep.subr.mxu0 0.0
        %806 = vmatpush1.msra.mxu0 0.0
        %807 = vmatprep.subr.mxu0 0.0
        %808 = vmatpush1.msra.mxu0 0.0
        %809 = vmatprep.subr.mxu0 0.0
        %810 = vmatpush1.msra.mxu0 0.0
        %811 = vmatprep.subr.mxu0 0.0
        %812 = vmatpush1.msra.mxu0 0.0
        %813 = vmatprep.mubr.f32.mxu0 0.0
        %v814 = vand.u32 %v739, 4294901760
        %v815 = vsub.f32 %v739, %v814
        %v816 = vand.u32 %v815, 4294901760
        %v817 = vsub.f32 %v815, %v816
        %v818 = vand.u32 %v817, 4294901760
        %819 = vmatmul.mubr.f32.gmra.mrb[0].mxu0 %v818
        %v820 = vpop.f32.mrb[0].mxu0
        %v821 = vadd.f32 %v735, %v820
        %v822 = vpop.f32.mrb[0].mxu0
        %823 = vdwg.mxu0
        %824 = vmatprep.subr.mxu0 0.0
        %v825 = vand.u32 %v722, 4294901760
        %v826 = vsub.f32 %v722, %v825
        %v827 = vand.u32 %v826, 4294901760
        %v828 = vsub.f32 %v826, %v827
        %v829 = vand.u32 %v828, 4294901760
        %830 = vmatpush1.msra.mxu0 %v829
        %831 = vmatprep.subr.mxu0 0.0
        %v832 = vand.u32 %v723, 4294901760
        %v833 = vsub.f32 %v723, %v832
        %v834 = vand.u32 %v833, 4294901760
        %v835 = vsub.f32 %v833, %v834
        %v836 = vand.u32 %v835, 4294901760
        %837 = vmatpush1.msra.mxu0 %v836
        %838 = vmatprep.subr.mxu0 0.0
        %v839 = vand.u32 %v724, 4294901760
        %v840 = vsub.f32 %v724, %v839
        %v841 = vand.u32 %v840, 4294901760
        %v842 = vsub.f32 %v840, %v841
        %v843 = vand.u32 %v842, 4294901760
        %844 = vmatpush1.msra.mxu0 %v843
        %845 = vmatprep.subr.mxu0 0.0
        %v846 = vand.u32 %v725, 4294901760
        %v847 = vsub.f32 %v725, %v846
        %v848 = vand.u32 %v847, 4294901760
        %v849 = vsub.f32 %v847, %v848
        %v850 = vand.u32 %v849, 4294901760
        %851 = vmatpush1.msra.mxu0 %v850
        %852 = vmatprep.subr.mxu0 0.0
        %v853 = vand.u32 %v726, 4294901760
        %v854 = vsub.f32 %v726, %v853
        %v855 = vand.u32 %v854, 4294901760
        %v856 = vsub.f32 %v854, %v855
        %v857 = vand.u32 %v856, 4294901760
        %858 = vmatpush1.msra.mxu0 %v857
        %859 = vmatprep.subr.mxu0 0.0
        %v860 = vand.u32 %v727, 4294901760
        %v861 = vsub.f32 %v727, %v860
        %v862 = vand.u32 %v861, 4294901760
        %v863 = vsub.f32 %v861, %v862
        %v864 = vand.u32 %v863, 4294901760
        %865 = vmatpush1.msra.mxu0 %v864
        %866 = vmatprep.subr.mxu0 0.0
        %v867 = vand.u32 %v728, 4294901760
        %v868 = vsub.f32 %v728, %v867
        %v869 = vand.u32 %v868, 4294901760
        %v870 = vsub.f32 %v868, %v869
        %v871 = vand.u32 %v870, 4294901760
        %872 = vmatpush1.msra.mxu0 %v871
        %873 = vmatprep.subr.mxu0 0.0
        %v874 = vand.u32 %v729, 4294901760
        %v875 = vsub.f32 %v729, %v874
        %v876 = vand.u32 %v875, 4294901760
        %v877 = vsub.f32 %v875, %v876
        %v878 = vand.u32 %v877, 4294901760
        %879 = vmatpush1.msra.mxu0 %v878
        %880 = vmatprep.subr.mxu0 0.0
        %881 = vmatpush1.msra.mxu0 0.0
        %882 = vmatprep.subr.mxu0 0.0
        %883 = vmatpush1.msra.mxu0 0.0
        %884 = vmatprep.subr.mxu0 0.0
        %885 = vmatpush1.msra.mxu0 0.0
        %886 = vmatprep.subr.mxu0 0.0
        %887 = vmatpush1.msra.mxu0 0.0
        %888 = vmatprep.subr.mxu0 0.0
        %889 = vmatpush1.msra.mxu0 0.0
        %890 = vmatprep.subr.mxu0 0.0
        %891 = vmatpush1.msra.mxu0 0.0
        %892 = vmatprep.subr.mxu0 0.0
        %893 = vmatpush1.msra.mxu0 0.0
        %894 = vmatprep.subr.mxu0 0.0
        %895 = vmatpush1.msra.mxu0 0.0
        %896 = vmatprep.subr.mxu0 0.0
        %897 = vmatpush1.msra.mxu0 0.0
        %898 = vmatprep.subr.mxu0 0.0
        %899 = vmatpush1.msra.mxu0 0.0
        %900 = vmatprep.subr.mxu0 0.0
        %901 = vmatpush1.msra.mxu0 0.0
        %902 = vmatprep.subr.mxu0 0.0
        %903 = vmatpush1.msra.mxu0 0.0
        %904 = vmatprep.subr.mxu0 0.0
        %905 = vmatpush1.msra.mxu0 0.0
        %906 = vmatprep.subr.mxu0 0.0
        %907 = vmatpush1.msra.mxu0 0.0
        %908 = vmatprep.subr.mxu0 0.0
        %909 = vmatpush1.msra.mxu0 0.0
        %910 = vmatprep.subr.mxu0 0.0
        %911 = vmatpush1.msra.mxu0 0.0
        %912 = vmatprep.subr.mxu0 0.0
        %913 = vmatpush1.msra.mxu0 0.0
        %914 = vmatprep.subr.mxu0 0.0
        %915 = vmatpush1.msra.mxu0 0.0
        %916 = vmatprep.subr.mxu0 0.0
        %917 = vmatpush1.msra.mxu0 0.0
        %918 = vmatprep.subr.mxu0 0.0
        %919 = vmatpush1.msra.mxu0 0.0
        %920 = vmatprep.subr.mxu0 0.0
        %921 = vmatpush1.msra.mxu0 0.0
        %922 = vmatprep.subr.mxu0 0.0
        %923 = vmatpush1.msra.mxu0 0.0
        %924 = vmatprep.subr.mxu0 0.0
        %925 = vmatpush1.msra.mxu0 0.0
        %926 = vmatprep.subr.mxu0 0.0
        %927 = vmatpush1.msra.mxu0 0.0
        %928 = vmatprep.mubr.f32.mxu0 0.0
        %v929 = vand.u32 %v739, 4294901760
        %930 = vmatmul.mubr.f32.gmra.mrb[0].mxu0 %v929
        %v931 = vpop.f32.mrb[0].mxu0
        %v932 = vadd.f32 %v821, %v931
        %v933 = vpop.f32.mrb[0].mxu0
        %934 = vdwg.mxu0
        %935 = vmatprep.subr.mxu0 0.0
        %v936 = vand.u32 %v722, 4294901760
        %v937 = vsub.f32 %v722, %v936
        %938 = vmatpush1.msra.mxu0 %v937
        %939 = vmatprep.subr.mxu0 0.0
        %v940 = vand.u32 %v723, 4294901760
        %v941 = vsub.f32 %v723, %v940
        %942 = vmatpush1.msra.mxu0 %v941
        %943 = vmatprep.subr.mxu0 0.0
        %v944 = vand.u32 %v724, 4294901760
        %v945 = vsub.f32 %v724, %v944
        %946 = vmatpush1.msra.mxu0 %v945
        %947 = vmatprep.subr.mxu0 0.0
        %v948 = vand.u32 %v725, 4294901760
        %v949 = vsub.f32 %v725, %v948
        %950 = vmatpush1.msra.mxu0 %v949
        %951 = vmatprep.subr.mxu0 0.0
        %v952 = vand.u32 %v726, 4294901760
        %v953 = vsub.f32 %v726, %v952
        %954 = vmatpush1.msra.mxu0 %v953
        %955 = vmatprep.subr.mxu0 0.0
        %v956 = vand.u32 %v727, 4294901760
        %v957 = vsub.f32 %v727, %v956
        %958 = vmatpush1.msra.mxu0 %v957
        %959 = vmatprep.subr.mxu0 0.0
        %v960 = vand.u32 %v728, 4294901760
        %v961 = vsub.f32 %v728, %v960
        %962 = vmatpush1.msra.mxu0 %v961
        %963 = vmatprep.subr.mxu0 0.0
        %v964 = vand.u32 %v729, 4294901760
        %v965 = vsub.f32 %v729, %v964
        %966 = vmatpush1.msra.mxu0 %v965
        %967 = vmatprep.subr.mxu0 0.0
        %968 = vmatpush1.msra.mxu0 0.0
        %969 = vmatprep.subr.mxu0 0.0
        %970 = vmatpush1.msra.mxu0 0.0
        %971 = vmatprep.subr.mxu0 0.0
        %972 = vmatpush1.msra.mxu0 0.0
        %973 = vmatprep.subr.mxu0 0.0
        %974 = vmatpush1.msra.mxu0 0.0
        %975 = vmatprep.subr.mxu0 0.0
        %976 = vmatpush1.msra.mxu0 0.0
        %977 = vmatprep.subr.mxu0 0.0
        %978 = vmatpush1.msra.mxu0 0.0
        %979 = vmatprep.subr.mxu0 0.0
        %980 = vmatpush1.msra.mxu0 0.0
        %981 = vmatprep.subr.mxu0 0.0
        %982 = vmatpush1.msra.mxu0 0.0
        %983 = vmatprep.subr.mxu0 0.0
        %984 = vmatpush1.msra.mxu0 0.0
        %985 = vmatprep.subr.mxu0 0.0
        %986 = vmatpush1.msra.mxu0 0.0
        %987 = vmatprep.subr.mxu0 0.0
        %988 = vmatpush1.msra.mxu0 0.0
        %989 = vmatprep.subr.mxu0 0.0
        %990 = vmatpush1.msra.mxu0 0.0
        %991 = vmatprep.subr.mxu0 0.0
        %992 = vmatpush1.msra.mxu0 0.0
        %993 = vmatprep.subr.mxu0 0.0
        %994 = vmatpush1.msra.mxu0 0.0
        %995 = vmatprep.subr.mxu0 0.0
        %996 = vmatpush1.msra.mxu0 0.0
        %997 = vmatprep.subr.mxu0 0.0
        %998 = vmatpush1.msra.mxu0 0.0
        %999 = vmatprep.subr.mxu0 0.0
        %1000 = vmatpush1.msra.mxu0 0.0
        %1001 = vmatprep.subr.mxu0 0.0
        %1002 = vmatpush1.msra.mxu0 0.0
        %1003 = vmatprep.subr.mxu0 0.0
        %1004 = vmatpush1.msra.mxu0 0.0
        %1005 = vmatprep.subr.mxu0 0.0
        %1006 = vmatpush1.msra.mxu0 0.0
        %1007 = vmatprep.subr.mxu0 0.0
        %1008 = vmatpush1.msra.mxu0 0.0
        %1009 = vmatprep.subr.mxu0 0.0
        %1010 = vmatpush1.msra.mxu0 0.0
        %1011 = vmatprep.subr.mxu0 0.0
        %1012 = vmatpush1.msra.mxu0 0.0
        %1013 = vmatprep.subr.mxu0 0.0
        %1014 = vmatpush1.msra.mxu0 0.0
        %1015 = vmatprep.mubr.f32.mxu0 0.0
        %v1016 = vand.u32 %v739, 4294901760
        %v1017 = vsub.f32 %v739, %v1016
        %1018 = vmatmul.mubr.f32.gmra.mrb[0].mxu0 %v1017
        %v1019 = vpop.f32.mrb[0].mxu0
        %v1020 = vadd.f32 %v932, %v1019
        %v1021 = vpop.f32.mrb[0].mxu0
        %1022 = vdwg.mxu0
        %1023 = vmatprep.subr.mxu0 0.0
        %v1024 = vand.u32 %v722, 4294901760
        %1025 = vmatpush1.msra.mxu0 %v1024
        %1026 = vmatprep.subr.mxu0 0.0
        %v1027 = vand.u32 %v723, 4294901760
        %1028 = vmatpush1.msra.mxu0 %v1027
        %1029 = vmatprep.subr.mxu0 0.0
        %v1030 = vand.u32 %v724, 4294901760
        %1031 = vmatpush1.msra.mxu0 %v1030
        %1032 = vmatprep.subr.mxu0 0.0
        %v1033 = vand.u32 %v725, 4294901760
        %1034 = vmatpush1.msra.mxu0 %v1033
        %1035 = vmatprep.subr.mxu0 0.0
        %v1036 = vand.u32 %v726, 4294901760
        %1037 = vmatpush1.msra.mxu0 %v1036
        %1038 = vmatprep.subr.mxu0 0.0
        %v1039 = vand.u32 %v727, 4294901760
        %1040 = vmatpush1.msra.mxu0 %v1039
        %1041 = vmatprep.subr.mxu0 0.0
        %v1042 = vand.u32 %v728, 4294901760
        %1043 = vmatpush1.msra.mxu0 %v1042
        %1044 = vmatprep.subr.mxu0 0.0
        %v1045 = vand.u32 %v729, 4294901760
        %1046 = vmatpush1.msra.mxu0 %v1045
        %1047 = vmatprep.subr.mxu0 0.0
        %1048 = vmatpush1.msra.mxu0 0.0
        %1049 = vmatprep.subr.mxu0 0.0
        %1050 = vmatpush1.msra.mxu0 0.0
        %1051 = vmatprep.subr.mxu0 0.0
        %1052 = vmatpush1.msra.mxu0 0.0
        %1053 = vmatprep.subr.mxu0 0.0
        %1054 = vmatpush1.msra.mxu0 0.0
        %1055 = vmatprep.subr.mxu0 0.0
        %1056 = vmatpush1.msra.mxu0 0.0
        %1057 = vmatprep.subr.mxu0 0.0
        %1058 = vmatpush1.msra.mxu0 0.0
        %1059 = vmatprep.subr.mxu0 0.0
        %1060 = vmatpush1.msra.mxu0 0.0
        %1061 = vmatprep.subr.mxu0 0.0
        %1062 = vmatpush1.msra.mxu0 0.0
        %1063 = vmatprep.subr.mxu0 0.0
        %1064 = vmatpush1.msra.mxu0 0.0
        %1065 = vmatprep.subr.mxu0 0.0
        %1066 = vmatpush1.msra.mxu0 0.0
        %1067 = vmatprep.subr.mxu0 0.0
        %1068 = vmatpush1.msra.mxu0 0.0
        %1069 = vmatprep.subr.mxu0 0.0
        %1070 = vmatpush1.msra.mxu0 0.0
        %1071 = vmatprep.subr.mxu0 0.0
        %1072 = vmatpush1.msra.mxu0 0.0
        %1073 = vmatprep.subr.mxu0 0.0
        %1074 = vmatpush1.msra.mxu0 0.0
        %1075 = vmatprep.subr.mxu0 0.0
        %1076 = vmatpush1.msra.mxu0 0.0
        %1077 = vmatprep.subr.mxu0 0.0
        %1078 = vmatpush1.msra.mxu0 0.0
        %1079 = vmatprep.subr.mxu0 0.0
        %1080 = vmatpush1.msra.mxu0 0.0
        %1081 = vmatprep.subr.mxu0 0.0
        %1082 = vmatpush1.msra.mxu0 0.0
        %1083 = vmatprep.subr.mxu0 0.0
        %1084 = vmatpush1.msra.mxu0 0.0
        %1085 = vmatprep.subr.mxu0 0.0
        %1086 = vmatpush1.msra.mxu0 0.0
        %1087 = vmatprep.subr.mxu0 0.0
        %1088 = vmatpush1.msra.mxu0 0.0
        %1089 = vmatprep.subr.mxu0 0.0
        %1090 = vmatpush1.msra.mxu0 0.0
        %1091 = vmatprep.subr.mxu0 0.0
        %1092 = vmatpush1.msra.mxu0 0.0
        %1093 = vmatprep.subr.mxu0 0.0
        %1094 = vmatpush1.msra.mxu0 0.0
        %1095 = vmatprep.mubr.f32.mxu0 0.0
        %v1096 = vand.u32 %v739, 4294901760
        %v1097 = vsub.f32 %v739, %v1096
        %v1098 = vand.u32 %v1097, 4294901760
        %1099 = vmatmul.mubr.f32.gmra.mrb[0].mxu0 %v1098
        %v1100 = vpop.f32.mrb[0].mxu0
        %v1101 = vadd.f32 %v1020, %v1100
        %v1102 = vpop.f32.mrb[0].mxu0
        %1103 = vdwg.mxu0
        %1104 = vmatprep.subr.mxu0 0.0
        %v1105 = vand.u32 %v722, 4294901760
        %v1106 = vsub.f32 %v722, %v1105
        %v1107 = vand.u32 %v1106, 4294901760
        %1108 = vmatpush1.msra.mxu0 %v1107
        %1109 = vmatprep.subr.mxu0 0.0
        %v1110 = vand.u32 %v723, 4294901760
        %v1111 = vsub.f32 %v723, %v1110
        %v1112 = vand.u32 %v1111, 4294901760
        %1113 = vmatpush1.msra.mxu0 %v1112
        %1114 = vmatprep.subr.mxu0 0.0
        %v1115 = vand.u32 %v724, 4294901760
        %v1116 = vsub.f32 %v724, %v1115
        %v1117 = vand.u32 %v1116, 4294901760
        %1118 = vmatpush1.msra.mxu0 %v1117
        %1119 = vmatprep.subr.mxu0 0.0
        %v1120 = vand.u32 %v725, 4294901760
        %v1121 = vsub.f32 %v725, %v1120
        %v1122 = vand.u32 %v1121, 4294901760
        %1123 = vmatpush1.msra.mxu0 %v1122
        %1124 = vmatprep.subr.mxu0 0.0
        %v1125 = vand.u32 %v726, 4294901760
        %v1126 = vsub.f32 %v726, %v1125
        %v1127 = vand.u32 %v1126, 4294901760
        %1128 = vmatpush1.msra.mxu0 %v1127
        %1129 = vmatprep.subr.mxu0 0.0
        %v1130 = vand.u32 %v727, 4294901760
        %v1131 = vsub.f32 %v727, %v1130
        %v1132 = vand.u32 %v1131, 4294901760
        %1133 = vmatpush1.msra.mxu0 %v1132
        %1134 = vmatprep.subr.mxu0 0.0
        %v1135 = vand.u32 %v728, 4294901760
        %v1136 = vsub.f32 %v728, %v1135
        %v1137 = vand.u32 %v1136, 4294901760
        %1138 = vmatpush1.msra.mxu0 %v1137
        %1139 = vmatprep.subr.mxu0 0.0
        %v1140 = vand.u32 %v729, 4294901760
        %v1141 = vsub.f32 %v729, %v1140
        %v1142 = vand.u32 %v1141, 4294901760
        %1143 = vmatpush1.msra.mxu0 %v1142
        %1144 = vmatprep.subr.mxu0 0.0
        %1145 = vmatpush1.msra.mxu0 0.0
        %1146 = vmatprep.subr.mxu0 0.0
        %1147 = vmatpush1.msra.mxu0 0.0
        %1148 = vmatprep.subr.mxu0 0.0
        %1149 = vmatpush1.msra.mxu0 0.0
        %1150 = vmatprep.subr.mxu0 0.0
        %1151 = vmatpush1.msra.mxu0 0.0
        %1152 = vmatprep.subr.mxu0 0.0
        %1153 = vmatpush1.msra.mxu0 0.0
        %1154 = vmatprep.subr.mxu0 0.0
        %1155 = vmatpush1.msra.mxu0 0.0
        %1156 = vmatprep.subr.mxu0 0.0
        %1157 = vmatpush1.msra.mxu0 0.0
        %1158 = vmatprep.subr.mxu0 0.0
        %1159 = vmatpush1.msra.mxu0 0.0
        %1160 = vmatprep.subr.mxu0 0.0
        %1161 = vmatpush1.msra.mxu0 0.0
        %1162 = vmatprep.subr.mxu0 0.0
        %1163 = vmatpush1.msra.mxu0 0.0
        %1164 = vmatprep.subr.mxu0 0.0
        %1165 = vmatpush1.msra.mxu0 0.0
        %1166 = vmatprep.subr.mxu0 0.0
        %1167 = vmatpush1.msra.mxu0 0.0
        %1168 = vmatprep.subr.mxu0 0.0
        %1169 = vmatpush1.msra.mxu0 0.0
        %1170 = vmatprep.subr.mxu0 0.0
        %1171 = vmatpush1.msra.mxu0 0.0
        %1172 = vmatprep.subr.mxu0 0.0
        %1173 = vmatpush1.msra.mxu0 0.0
        %1174 = vmatprep.subr.mxu0 0.0
        %1175 = vmatpush1.msra.mxu0 0.0
        %1176 = vmatprep.subr.mxu0 0.0
        %1177 = vmatpush1.msra.mxu0 0.0
        %1178 = vmatprep.subr.mxu0 0.0
        %1179 = vmatpush1.msra.mxu0 0.0
        %1180 = vmatprep.subr.mxu0 0.0
        %1181 = vmatpush1.msra.mxu0 0.0
        %1182 = vmatprep.subr.mxu0 0.0
        %1183 = vmatpush1.msra.mxu0 0.0
        %1184 = vmatprep.subr.mxu0 0.0
        %1185 = vmatpush1.msra.mxu0 0.0
        %1186 = vmatprep.subr.mxu0 0.0
        %1187 = vmatpush1.msra.mxu0 0.0
        %1188 = vmatprep.subr.mxu0 0.0
        %1189 = vmatpush1.msra.mxu0 0.0
        %1190 = vmatprep.subr.mxu0 0.0
        %1191 = vmatpush1.msra.mxu0 0.0
        %1192 = vmatprep.mubr.f32.mxu0 0.0
        %v1193 = vand.u32 %v739, 4294901760
        %1194 = vmatmul.mubr.f32.gmra.mrb[0].mxu0 %v1193
        %v1195 = vpop.f32.mrb[0].mxu0
        %v1196 = vadd.f32 %v1101, %v1195
        %v1197 = vpop.f32.mrb[0].mxu0
        %1198 = vdwg.mxu0
        %1199 = vmatprep.subr.mxu0 0.0
        %v1200 = vand.u32 %v722, 4294901760
        %1201 = vmatpush1.msra.mxu0 %v1200
        %1202 = vmatprep.subr.mxu0 0.0
        %v1203 = vand.u32 %v723, 4294901760
        %1204 = vmatpush1.msra.mxu0 %v1203
        %1205 = vmatprep.subr.mxu0 0.0
        %v1206 = vand.u32 %v724, 4294901760
        %1207 = vmatpush1.msra.mxu0 %v1206
        %1208 = vmatprep.subr.mxu0 0.0
        %v1209 = vand.u32 %v725, 4294901760
        %1210 = vmatpush1.msra.mxu0 %v1209
        %1211 = vmatprep.subr.mxu0 0.0
        %v1212 = vand.u32 %v726, 4294901760
        %1213 = vmatpush1.msra.mxu0 %v1212
        %1214 = vmatprep.subr.mxu0 0.0
        %v1215 = vand.u32 %v727, 4294901760
        %1216 = vmatpush1.msra.mxu0 %v1215
        %1217 = vmatprep.subr.mxu0 0.0
        %v1218 = vand.u32 %v728, 4294901760
        %1219 = vmatpush1.msra.mxu0 %v1218
        %1220 = vmatprep.subr.mxu0 0.0
        %v1221 = vand.u32 %v729, 4294901760
        %1222 = vmatpush1.msra.mxu0 %v1221
        %1223 = vmatprep.subr.mxu0 0.0
        %1224 = vmatpush1.msra.mxu0 0.0
        %1225 = vmatprep.subr.mxu0 0.0
        %1226 = vmatpush1.msra.mxu0 0.0
        %1227 = vmatprep.subr.mxu0 0.0
        %1228 = vmatpush1.msra.mxu0 0.0
        %1229 = vmatprep.subr.mxu0 0.0
        %1230 = vmatpush1.msra.mxu0 0.0
        %1231 = vmatprep.subr.mxu0 0.0
        %1232 = vmatpush1.msra.mxu0 0.0
        %1233 = vmatprep.subr.mxu0 0.0
        %1234 = vmatpush1.msra.mxu0 0.0
        %1235 = vmatprep.subr.mxu0 0.0
        %1236 = vmatpush1.msra.mxu0 0.0
        %1237 = vmatprep.subr.mxu0 0.0
        %1238 = vmatpush1.msra.mxu0 0.0
        %1239 = vmatprep.subr.mxu0 0.0
        %1240 = vmatpush1.msra.mxu0 0.0
        %1241 = vmatprep.subr.mxu0 0.0
        %1242 = vmatpush1.msra.mxu0 0.0
        %1243 = vmatprep.subr.mxu0 0.0
        %1244 = vmatpush1.msra.mxu0 0.0
        %1245 = vmatprep.subr.mxu0 0.0
        %1246 = vmatpush1.msra.mxu0 0.0
        %1247 = vmatprep.subr.mxu0 0.0
        %1248 = vmatpush1.msra.mxu0 0.0
        %1249 = vmatprep.subr.mxu0 0.0
        %1250 = vmatpush1.msra.mxu0 0.0
        %1251 = vmatprep.subr.mxu0 0.0
        %1252 = vmatpush1.msra.mxu0 0.0
        %1253 = vmatprep.subr.mxu0 0.0
        %1254 = vmatpush1.msra.mxu0 0.0
        %1255 = vmatprep.subr.mxu0 0.0
        %1256 = vmatpush1.msra.mxu0 0.0
        %1257 = vmatprep.subr.mxu0 0.0
        %1258 = vmatpush1.msra.mxu0 0.0
        %1259 = vmatprep.subr.mxu0 0.0
        %1260 = vmatpush1.msra.mxu0 0.0
        %1261 = vmatprep.subr.mxu0 0.0
        %1262 = vmatpush1.msra.mxu0 0.0
        %1263 = vmatprep.subr.mxu0 0.0
        %1264 = vmatpush1.msra.mxu0 0.0
        %1265 = vmatprep.subr.mxu0 0.0
        %1266 = vmatpush1.msra.mxu0 0.0
        %1267 = vmatprep.subr.mxu0 0.0
        %1268 = vmatpush1.msra.mxu0 0.0
        %1269 = vmatprep.subr.mxu0 0.0
        %1270 = vmatpush1.msra.mxu0 0.0
        %1271 = vmatprep.mubr.f32.mxu0 0.0
        %v1272 = vand.u32 %v739, 4294901760
        %1273 = vmatmul.mubr.f32.gmra.mrb[0].mxu0 %v1272
        %v1274 = vpop.f32.mrb[0].mxu0
        %v1275 = vadd.f32 %v1196, %v1274
        %v1276 = vpop.f32.mrb[0].mxu0
        %1277 = vdwg.mxu0
        %1278 = vst.msk [vmem:[%s215] sm:$0xff] %vm232, %v1275
        %s1279 = sand.u32 %s137, 1
        %s1280 = scalar_lea.sflag [#allocation3], %s1279
        %s1281 = sand.u32 %s137, 1
        %s1282 = smul.addr %s1281, 8
        %s1283 = scalar_lea.vmem [#allocation2], %s1282
        // Predicated region
        $region41: #{tpu_custom_call.1} parent=39 // pred_check
          %p1284 = pneg %p147
        $region42: #{tpu_custom_call.1} parent=39 // pred_check_branch
          %1286 = sbr.rel (%p1284) target = $region44
        $region43: #{tpu_custom_call.1} parent=39 // pred_region
          %s1288 = ssub.s32 128, 128
          %1289 = vsyncadd %s1280, %s1288
          %s1290 = smul.addr %s19, 128
          %s1291 = scalar_lea.hbm %s5, %s1290
          %s1293 = sshll.u32 %s1283, 4
          %s1294 = int_to_ptr.vmem [resolvable:$true] %s1293
          %1296 = dma.vmem_to_hbm [thread:$0]  %s1294, 128, %s1291, %s1280
        $region44: #{tpu_custom_call.1} parent=39 // pred_fallthru
          _
      $region40: #{tpu_custom_call.1} parent=5 // pred_fallthru
        _
      %p1297 = scmp.le.s32.totalorder 2, %s14
      // Predicated region
      $region45: #{tpu_custom_call.1} parent=5 // pred_check
        %p1298 = pneg %p1297
      $region46: #{tpu_custom_call.1} parent=5 // pred_check_branch
        %1300 = sbr.rel (%p1298) target = $region48
      $region47: #{tpu_custom_call.1} parent=5 // pred_region
        %s1301 = ssub.s32 %s14, 2
        // Predicated region
        $region49: #{tpu_custom_call.1} parent=47 // pred_check
          %p1302 = pneg %p153
        $region50: #{tpu_custom_call.1} parent=47 // pred_check_branch
          %1304 = sbr.rel (%p1302) target = $region52
        $region51: #{tpu_custom_call.1} parent=47 // pred_region
          %s1305 = sand.u32 %s138, 1
          %s1306 = scalar_lea.sflag [#allocation3], %s1305
          %s1307 = sand.u32 %s138, 1
          %s1308 = smul.addr %s1307, 8
          %s1309 = scalar_lea.vmem [#allocation2], %s1308
          %1310 = dma.done %s1306, 128
        $region52: #{tpu_custom_call.1} parent=47 // pred_fallthru
          _
      $region48: #{tpu_custom_call.1} parent=5 // pred_fallthru
        _
    $region6: #{tpu_custom_call.1} parent=1 // loop_footer
      %s18 = sadd.s32 1, %s14
    $region7: #{tpu_custom_call.1} parent=1 // loop_footer_branch
      %13 = sbr.rel target = $region3
    $region8: #{tpu_custom_call.1} parent=1 // loop_exit
      _
    %1311 = vsyncpa [#allocation3], 1
    %s1312 = scalar_lea.sflag [#allocation3], 1
    %1313 = vsyncpa %s1312, 1

</llo_original>
